<compile_context>
chip_gen: v7x
topology: tpu7x:2x2x1
jax: 0.10.0
libtpu: 0.0.40
codegen_flags: <defaults>
</compile_context>

<pallas_src>
import functools
import numpy as np

import jax
import jax.numpy as jnp
from jax.experimental import pallas as pl
from jax.experimental.pallas import tpu as pltpu

EPS = 1e-5
# Set to jnp.bfloat16 on v6e/v7x for production channel counts (accumulation stays
# f32 via preferred_element_type).  f32 here keeps the strict numerical check.
MXU_DTYPE = jnp.float32


def _interp_matrix_1d(n_out, n_in):
    """PyTorch bilinear weights, align_corners=False (negative src idx clamped)."""
    M = np.zeros((n_out, n_in), np.float32)
    for o in range(n_out):
        src = (o + 0.5) * (n_in / n_out) - 0.5
        src = max(src, 0.0)
        i0 = min(int(np.floor(src)), n_in - 1)
        i1 = min(i0 + 1, n_in - 1)
        lam = src - i0
        M[o, i0] += 1.0 - lam
        M[o, i1] += lam
    return M


# --------------------------- kernel 1: bilinear x2 ---------------------------
# Separable interpolation as two small MXU matmuls on a (H, W*Cin) layout:
#     t  = Mh @ x2d                 -> (H2, W*Cin)
#     up = t @ kron(Mw^T, I_Cin)    -> (H2, W2*Cin)   (lane-dense output store)
def upsample_kernel(x_ref, mh_ref, mwk_ref, o_ref):
    t = jnp.dot(mh_ref[...].astype(MXU_DTYPE), x_ref[...].astype(MXU_DTYPE),
                preferred_element_type=jnp.float32)
    o_ref[...] = jnp.dot(t.astype(MXU_DTYPE), mwk_ref[...].astype(MXU_DTYPE),
                         preferred_element_type=jnp.float32)


# ---------- kernel 2: fused Upsample-conv + ResnetBlock (one sample) ---------
def ublock_fused_kernel(up_pad_ref, wup_ref, bup_ref,
                        w1_ref, g1_ref, be1_ref,
                        w2_ref, g2_ref, be2_ref,
                        wres_ref, bres_ref,
                        o_ref,
                        h0_pad, h1_pad,
                        *, H2, W2, Cin, Cout):
    HW = H2 * W2

    def conv3x3(src_ref, w_ref, cin):
        # 3x3 'same' conv from a spatially pre-padded (H2+2, W2+2, cin) buffer.
        # 9 accumulating MXU dots (K=cin is the inherent width at these channel
        # counts; switch to im2col / weight-stationary for large C).
        acc = jnp.zeros((HW, Cout), jnp.float32)
        for dy in range(3):
            for dx in range(3):
                patch = src_ref[dy:dy + H2, dx:dx + W2, :].reshape(HW, cin)
                acc = acc + jnp.dot(patch.astype(MXU_DTYPE),
                                    w_ref[dy, dx].astype(MXU_DTYPE),
                                    preferred_element_type=jnp.float32)
        return acc

    def silu(v):
        return v * (1.0 / (1.0 + jnp.exp(-v)))

    def gn1(v, gamma, beta):
        # GroupNorm(num_groups=1): stats over the whole sample (centered,
        # two-pass variance), per-channel affine.  v: (HW, Cout).
        m = jnp.mean(v)
        var = jnp.mean(jnp.square(v - m))
        return (v - m) * jax.lax.rsqrt(var + EPS) * gamma + beta

    # Zero the scratch so the 1-px halo reads back as zero padding.  (Zeroed
    # every step: with a "parallel" batch axis each core owns its own
    # iterations, so a program_id==0-only init would be unsafe on v7x.)
    h0_pad[...] = jnp.zeros(h0_pad.shape, h0_pad.dtype)
    h1_pad[...] = jnp.zeros(h1_pad.shape, h1_pad.dtype)

    # Upsample's conv3x3 + bias + SiLU -> h0, kept resident in VMEM (padded).
    h0 = silu(conv3x3(up_pad_ref, wup_ref, Cin) + bup_ref[...])
    h0_pad[1:H2 + 1, 1:W2 + 1, :] = h0.reshape(H2, W2, Cout)

    # ResnetBlock conv1 -> GroupNorm(1) -> SiLU -> h1, kept in VMEM (padded).
    h1 = silu(gn1(conv3x3(h0_pad, w1_ref, Cout), g1_ref[...], be1_ref[...]))
    h1_pad[1:H2 + 1, 1:W2 + 1, :] = h1.reshape(H2, W2, Cout)

    # conv2 -> GroupNorm(1) -> SiLU, plus the 1x1 residual conv on h0.
    y = silu(gn1(conv3x3(h1_pad, w2_ref, Cout), g2_ref[...], be2_ref[...]))
    h0_flat = h0_pad[1:H2 + 1, 1:W2 + 1, :].reshape(HW, Cout)
    res = jnp.dot(h0_flat.astype(MXU_DTYPE), wres_ref[...].astype(MXU_DTYPE),
                  preferred_element_type=jnp.float32) + bres_ref[...]
    o_ref[...] = y + res


# ------------------------------ pallas wrapper -------------------------------
def ublock_forward(x_nchw, params):
    """UBlock forward. x_nchw: (N, Cin, H, W) -> (N, Cout, 2H, 2W)."""
    N, Cin, H, W = x_nchw.shape
    H2, W2 = 2 * H, 2 * W
    Cout = params["w_up"].shape[-1]

    # Host-side glue: NHWC, with (W, Cin) flattened onto the lane axis.
    x2d = jnp.transpose(x_nchw, (0, 2, 3, 1)).astype(jnp.float32).reshape(N, H, W * Cin)
    mh = jnp.asarray(_interp_matrix_1d(H2, H))                                   # (H2, H)
    mwk = jnp.asarray(np.kron(_interp_matrix_1d(W2, W).T,
                              np.eye(Cin, dtype=np.float32)))                    # (W*Cin, W2*Cin)

    parallel = pltpu.CompilerParams(dimension_semantics=("parallel",))

    # 1) separable bilinear x2 upsample.
    up2d = pl.pallas_call(
        upsample_kernel,
        out_shape=jax.ShapeDtypeStruct((N, H2, W2 * Cin), jnp.float32),
        grid=(N,),
        in_specs=[pl.BlockSpec((None, H, W * Cin), lambda i: (i, 0, 0)),
                  pl.BlockSpec((H2, H), lambda i: (0, 0)),
                  pl.BlockSpec((W * Cin, W2 * Cin), lambda i: (0, 0))],
        out_specs=pl.BlockSpec((None, H2, W2 * Cin), lambda i: (i, 0, 0)),
        compiler_params=parallel,
    )(x2d, mh, mwk)

    # `up` (the small Cin-channel tensor) is the only HBM intermediate; the
    # Cout-channel h0/h1 never leave VMEM inside the fused kernel below.
    up_pad = jnp.pad(up2d.reshape(N, H2, W2, Cin),
                     ((0, 0), (1, 1), (1, 1), (0, 0)))

    full2 = lambda i: (0, 0)
    full4 = lambda i: (0, 0, 0, 0)
    col = lambda name: params[name].reshape(1, Cout)

    # 2) fused Upsample-conv + ResnetBlock.
    out2d = pl.pallas_call(
        functools.partial(ublock_fused_kernel, H2=H2, W2=W2, Cin=Cin, Cout=Cout),
        out_shape=jax.ShapeDtypeStruct((N, H2 * W2, Cout), jnp.float32),
        grid=(N,),
        in_specs=[pl.BlockSpec((None, H2 + 2, W2 + 2, Cin), lambda i: (i, 0, 0, 0)),
                  pl.BlockSpec((3, 3, Cin, Cout), full4),
                  pl.BlockSpec((1, Cout), full2),
                  pl.BlockSpec((3, 3, Cout, Cout), full4),
                  pl.BlockSpec((1, Cout), full2),
                  pl.BlockSpec((1, Cout), full2),
                  pl.BlockSpec((3, 3, Cout, Cout), full4),
                  pl.BlockSpec((1, Cout), full2),
                  pl.BlockSpec((1, Cout), full2),
                  pl.BlockSpec((Cout, Cout), full2),
                  pl.BlockSpec((1, Cout), full2)],
        out_specs=pl.BlockSpec((None, H2 * W2, Cout), lambda i: (i, 0, 0)),
        scratch_shapes=[pltpu.VMEM((H2 + 2, W2 + 2, Cout), jnp.float32),
                        pltpu.VMEM((H2 + 2, W2 + 2, Cout), jnp.float32)],
        compiler_params=parallel,
    )(up_pad, params["w_up"], col("b_up"),
      params["w1"], col("g1"), col("beta1"),
      params["w2"], col("g2"), col("beta2"),
      params["w_res"], col("b_res"))

    # Free reshape; single output transpose back to PyTorch NCHW.
    return jnp.transpose(out2d.reshape(N, H2, W2, Cout), (0, 3, 1, 2))


# ----------------------------- pure-JAX reference ----------------------------
def _conv3x3_ref(x, w):
    return jax.lax.conv_general_dilated(
        x, w, (1, 1), "SAME", dimension_numbers=("NHWC", "HWIO", "NHWC"))


def _gn_ref(y, gamma, beta):
    m = jnp.mean(y, axis=(1, 2, 3), keepdims=True)
    v = jnp.mean((y - m) ** 2, axis=(1, 2, 3), keepdims=True)
    return (y - m) * jax.lax.rsqrt(v + EPS) * gamma + beta


def ublock_reference(x_nchw, params):
    x = jnp.transpose(x_nchw, (0, 2, 3, 1)).astype(jnp.float32)
    N, H, W, Cin = x.shape
    H2, W2 = 2 * H, 2 * W
    Mh = jnp.asarray(_interp_matrix_1d(H2, H))
    Mw = jnp.asarray(_interp_matrix_1d(W2, W))
    up = jnp.einsum("ph,nhwc->npwc", Mh, x)
    up = jnp.einsum("qw,npwc->npqc", Mw, up)
    h0 = jax.nn.silu(_conv3x3_ref(up, params["w_up"]) + params["b_up"])
    h1 = jax.nn.silu(_gn_ref(_conv3x3_ref(h0, params["w1"]), params["g1"], params["beta1"]))
    h2 = jax.nn.silu(_gn_ref(_conv3x3_ref(h1, params["w2"]), params["g2"], params["beta2"]))
    res = jnp.einsum("nhwc,cd->nhwd", h0, params["w_res"]) + params["b_res"]
    return jnp.transpose(h2 + res, (0, 3, 1, 2))


# ----------------------------------- main ------------------------------------
if __name__ == "__main__":
    N, Cin, Cout, H, W = 2, 4, 8, 16, 16

    key = jax.random.PRNGKey(0)
    ks = jax.random.split(key, 11)
    params = {
        "w_up":  0.1 * jax.random.normal(ks[0], (3, 3, Cin, Cout), jnp.float32),
        "b_up":  0.1 * jax.random.normal(ks[1], (Cout,), jnp.float32),
        "w1":    0.1 * jax.random.normal(ks[2], (3, 3, Cout, Cout), jnp.float32),
        "g1":    1.0 + 0.1 * jax.random.normal(ks[3], (Cout,), jnp.float32),
        "beta1": 0.1 * jax.random.normal(ks[4], (Cout,), jnp.float32),
        "w2":    0.1 * jax.random.normal(ks[5], (3, 3, Cout, Cout), jnp.float32),
        "g2":    1.0 + 0.1 * jax.random.normal(ks[6], (Cout,), jnp.float32),
        "beta2": 0.1 * jax.random.normal(ks[7], (Cout,), jnp.float32),
        "w_res": 0.1 * jax.random.normal(ks[8], (Cout, Cout), jnp.float32),
        "b_res": 0.1 * jax.random.normal(ks[9], (Cout,), jnp.float32),
    }
    x = jax.random.normal(ks[10], (N, Cin, H, W), jnp.float32)     # NCHW like PyTorch

    out = jax.block_until_ready(ublock_forward(x, params))
    ref = jax.block_until_ready(ublock_reference(x, params))

    assert out.shape == (N, Cout, 2 * H, 2 * W), out.shape
    assert jnp.allclose(out, ref, rtol=1e-3, atol=1e-3), float(jnp.max(jnp.abs(out - ref)))
    print("KERNEL_OK")
</pallas_src>

<mosaic_0001>
module attributes {stable_mosaic.version = 11 : i64} {
  func.func @upsample_kernel(%arg0: i32, %arg1: memref<1x16x64xf32, #tpu.memory_space<vmem>>, %arg2: memref<32x16xf32, #tpu.memory_space<vmem>>, %arg3: memref<64x128xf32, #tpu.memory_space<vmem>>, %arg4: memref<1x32x128xf32, #tpu.memory_space<vmem>>) attributes {dimension_semantics = [#tpu.dimension_semantics<parallel>], iteration_bounds = array<i64: 2>, scalar_prefetch = 0 : i64, scratch_operands = 0 : i64, tpu.core_type = #tpu.core_type<tc>, window_params = [{transform_indices = @transform_0, window_bounds = array<i64: 1, 16, 64>}, {pipeline_mode = #tpu.pipeline_mode<synchronous>, transform_indices = @transform_1, window_bounds = array<i64: 32, 16>}, {pipeline_mode = #tpu.pipeline_mode<synchronous>, transform_indices = @transform_2, window_bounds = array<i64: 64, 128>}, {transform_indices = @transform_3, window_bounds = array<i64: 1, 32, 128>}]} {
    %c0 = arith.constant 0 : index
    %c0_0 = arith.constant 0 : index
    %0 = vector.load %arg2[%c0, %c0_0] : memref<32x16xf32, #tpu.memory_space<vmem>>, vector<32x16xf32>
    %c0_1 = arith.constant 0 : index
    %c0_2 = arith.constant 0 : index
    %c0_3 = arith.constant 0 : index
    %1 = vector.load %arg1[%c0_1, %c0_2, %c0_3] : memref<1x16x64xf32, #tpu.memory_space<vmem>>, vector<1x16x64xf32>
    %2 = vector.shape_cast %1 : vector<1x16x64xf32> to vector<16x64xf32>
    %cst = arith.constant dense<0.000000e+00> : vector<32x64xf32>
    %3 = tpu.matmul %0, %2, %cst {dimension_numbers = #tpu.dot_dimension_numbers<[1], [0], [0], [1], [0, 0, 1, 1], [], []>} : vector<32x16xf32>, vector<16x64xf32>, vector<32x64xf32> -> vector<32x64xf32>
    %c0_4 = arith.constant 0 : index
    %c0_5 = arith.constant 0 : index
    %4 = vector.load %arg3[%c0_4, %c0_5] : memref<64x128xf32, #tpu.memory_space<vmem>>, vector<64x128xf32>
    %cst_6 = arith.constant dense<0.000000e+00> : vector<32x128xf32>
    %5 = tpu.matmul %3, %4, %cst_6 {dimension_numbers = #tpu.dot_dimension_numbers<[1], [0], [0], [1], [0, 0, 1, 1], [], []>} : vector<32x64xf32>, vector<64x128xf32>, vector<32x128xf32> -> vector<32x128xf32>
    %c0_7 = arith.constant 0 : index
    %c0_8 = arith.constant 0 : index
    %c0_9 = arith.constant 0 : index
    %6 = vector.load %arg4[%c0_7, %c0_8, %c0_9] : memref<1x32x128xf32, #tpu.memory_space<vmem>>, vector<1x32x128xf32>
    %7 = vector.shape_cast %6 : vector<1x32x128xf32> to vector<32x128xf32>
    %8 = vector.shape_cast %5 : vector<32x128xf32> to vector<1x32x128xf32>
    tpu.vector_store %arg4[%c0_7, %c0_8, %c0_9], %8 {strides = array<i32>} : memref<1x32x128xf32, #tpu.memory_space<vmem>>, vector<1x32x128xf32>,
    return
  }
  func.func @transform_0(%arg0: i32) -> (i32, i32, i32) {
    %c0_i32 = arith.constant 0 : i32
    %c0_i32_0 = arith.constant 0 : i32
    %c0_i32_1 = arith.constant 0 : i32
    return %arg0, %c0_i32, %c0_i32_0 : i32, i32, i32
  }
  func.func @transform_1(%arg0: i32) -> (i32, i32) {
    %c0_i32 = arith.constant 0 : i32
    %c0_i32_0 = arith.constant 0 : i32
    %c0_i32_1 = arith.constant 0 : i32
    return %c0_i32, %c0_i32_0 : i32, i32
  }
  func.func @transform_2(%arg0: i32) -> (i32, i32) {
    %c0_i32 = arith.constant 0 : i32
    %c0_i32_0 = arith.constant 0 : i32
    %c0_i32_1 = arith.constant 0 : i32
    return %c0_i32, %c0_i32_0 : i32, i32
  }
  func.func @transform_3(%arg0: i32) -> (i32, i32, i32) {
    %c0_i32 = arith.constant 0 : i32
    %c0_i32_0 = arith.constant 0 : i32
    %c0_i32_1 = arith.constant 0 : i32
    return %arg0, %c0_i32, %c0_i32_0 : i32, i32, i32
  }
}

</mosaic_0001>

<llo_original>
// kernel: tpu_custom_call.1
$region0: #{tpu_custom_call.1}
  #allocation0 [shape = 'u32[]', space=smem, size = 0x4, offset = 0x4, fixed_abs, tag = 'smem constant byte address 0x4 - core index']
  #allocation1 [shape = 'u32[144,128]{1,0:T(1,128)}', space=vmem, size = 0x12000, scoped, tag = 'internal scratch']
  %s0 = inlined_call_operand.vmem [shape: f32[2,16,64], index: 0, kind: input, shape index: {}]
  %s1 = inlined_call_operand.vmem [shape: f32[32,16], index: 1, kind: input, shape index: {}]
  %s2 = inlined_call_operand.hbm [shape: f32[64,128], index: 2, kind: input, shape index: {}]
  %s3 = inlined_call_operand.hbm [shape: f32[2,32,128], index: 3, kind: output, shape index: {}]
  %s4 = sld [smem:[#allocation0]]
  $region49: #{tpu_custom_call.1} parent=0
    _
  %s6 = ssub.s32 1, %s4
  %s7 = scalar_select 0, %s6, %s4
  $region1: #{tpu_custom_call.1} parent=0
    #allocation2 [shape = 'u8[32768]{0}', space=vmem, size = 0x8000, scoped, tag = 'input window, operand 2, single buffered']
    #allocation3 [shape = 's32[2]{0}', space=sflag, size = 0x8, scoped, tag = 'scoped memory for tpu_custom_call.1']
    #allocation4 [shape = 's32[2]{0}', space=sflag, size = 0x8, scoped, tag = 'scoped memory for tpu_custom_call.1']
    #allocation5 [shape = 'u8[32768]{0}', space=vmem, size = 0x8000, scoped, tag = 'output window, operand 0']
    %8 = vsyncpa [#allocation3], 0
    %9 = vsyncpa [#allocation4], 0
    %s10 = scalar_lea.sflag [#allocation4], 1
    %11 = vsyncpa %s10, 0
    loop: start=0, step=1, limit=4
    $region2: #{tpu_custom_call.1} parent=1 // loop_pre_header
      _
    $region3: #{tpu_custom_call.1} parent=1 // loop_header
      %s13 = sphi 0, %s17
      %p14 = scmp.ge.s32.totalorder %s13, 4
      %s23 = sphi 0, %s25
      %s26 = sphi 0, %s23
      %s27 = sphi 0, %s26
      %s43 = sphi 0, %s27
      %s47 = sphi 0, %s47
      %s49 = sphi 0, %s47
      %s50 = sphi 0, %s49
      %s64 = sphi 0, %s50
      %s68 = sphi 0, %s68
      %s70 = sphi 0, %s68
      %s71 = sphi 0, %s70
      %s85 = sphi 0, %s71
      %s91 = sphi 0, %s93
      %s94 = sphi 0, %s91
      %s95 = sphi 0, %s94
      %s111 = sphi 0, %s95
    $region4: #{tpu_custom_call.1} parent=1 // loop_header_branch
      %16 = sbr.rel (%p14) target = $region8
    $region5: #{tpu_custom_call.1} parent=1 // loop_body
      %s18 = ssub.s32 %s13, 1
      %s19 = ssub.s32 %s13, 2
      %s20 = sadd.s32 %s13, 1
      %s21 = ssub.s32 %s13, %s20
      %p22 = scmp.eq.s32.totalorder %s21, 0
      %s24 = sadd.s32 %s23, 1
      %s25 = scalar_select %p22, %s23, %s24
      %p28 = pneg %p22
      %p29 = scmp.eq.s32.totalorder %s13, 1
      %p30 = por %p28, %p29
      %p31 = scmp.ne.s32.totalorder %s23, %s26
      %p32 = scmp.eq.s32.totalorder %s13, 0
      %p33 = por %p31, %p32
      %p34 = scmp.ne.s32.totalorder %s23, %s26
      %p35 = scmp.eq.s32.totalorder %s18, 1
      %p36 = por %p34, %p35
      %p37 = scmp.ne.s32.totalorder %s26, %s27
      %p38 = scmp.eq.s32.totalorder %s18, 0
      %p39 = por %p37, %p38
      %p40 = scmp.ne.s32.totalorder %s26, %s27
      %p41 = scmp.eq.s32.totalorder %s19, 1
      %p42 = por %p40, %p41
      %p44 = scmp.ne.s32.totalorder %s27, %s43
      %p45 = scmp.eq.s32.totalorder %s19, 0
      %p46 = por %p44, %p45
      %s48 = sadd.s32 %s47, 1
      %p51 = scmp.eq.s32.totalorder %s13, 1
      %p52 = scmp.ne.s32.totalorder %s47, %s49
      %p53 = scmp.eq.s32.totalorder %s13, 0
      %p54 = por %p52, %p53
      %p55 = scmp.ne.s32.totalorder %s47, %s49
      %p56 = scmp.eq.s32.totalorder %s18, 1
      %p57 = por %p55, %p56
      %p58 = scmp.ne.s32.totalorder %s49, %s50
      %p59 = scmp.eq.s32.totalorder %s18, 0
      %p60 = por %p58, %p59
      %p61 = scmp.ne.s32.totalorder %s49, %s50
      %p62 = scmp.eq.s32.totalorder %s19, 1
      %p63 = por %p61, %p62
      %p65 = scmp.ne.s32.totalorder %s50, %s64
      %p66 = scmp.eq.s32.totalorder %s19, 0
      %p67 = por %p65, %p66
      %s69 = sadd.s32 %s68, 1
      %p72 = scmp.eq.s32.totalorder %s13, 1
      %p73 = scmp.ne.s32.totalorder %s68, %s70
      %p74 = scmp.eq.s32.totalorder %s13, 0
      %p75 = por %p73, %p74
      %p76 = scmp.ne.s32.totalorder %s68, %s70
      %p77 = scmp.eq.s32.totalorder %s18, 1
      %p78 = por %p76, %p77
      %p79 = scmp.ne.s32.totalorder %s70, %s71
      %p80 = scmp.eq.s32.totalorder %s18, 0
      %p81 = por %p79, %p80
      %p82 = scmp.ne.s32.totalorder %s70, %s71
      %p83 = scmp.eq.s32.totalorder %s19, 1
      %p84 = por %p82, %p83
      %p86 = scmp.ne.s32.totalorder %s71, %s85
      %p87 = scmp.eq.s32.totalorder %s19, 0
      %p88 = por %p86, %p87
      %s89 = ssub.s32 %s13, %s20
      %p90 = scmp.eq.s32.totalorder %s89, 0
      %s92 = sadd.s32 %s91, 1
      %s93 = scalar_select %p90, %s91, %s92
      %p96 = pneg %p90
      %p97 = scmp.eq.s32.totalorder %s13, 1
      %p98 = por %p96, %p97
      %p99 = scmp.ne.s32.totalorder %s91, %s94
      %p100 = scmp.eq.s32.totalorder %s13, 0
      %p101 = por %p99, %p100
      %p102 = scmp.ne.s32.totalorder %s91, %s94
      %p103 = scmp.eq.s32.totalorder %s18, 1
      %p104 = por %p102, %p103
      %p105 = scmp.ne.s32.totalorder %s94, %s95
      %p106 = scmp.eq.s32.totalorder %s18, 0
      %p107 = por %p105, %p106
      %p108 = scmp.ne.s32.totalorder %s94, %s95
      %p109 = scmp.eq.s32.totalorder %s19, 1
      %p110 = por %p108, %p109
      %p112 = scmp.ne.s32.totalorder %s95, %s111
      %p113 = scmp.eq.s32.totalorder %s19, 0
      %p114 = por %p112, %p113
      %p115 = scmp.le.s32.totalorder 1, %s13
      %p116 = scmp.lt.s32.totalorder %s13, 3
      %p117 = pnand %p115, %p116
      %p118 = pneg %p117
      // Predicated region
      $region9: #{tpu_custom_call.1} parent=5 // pred_check
        _
      $region10: #{tpu_custom_call.1} parent=5 // pred_check_branch
        %120 = sbr.rel (%p117) target = $region12
      $region11: #{tpu_custom_call.1} parent=5 // pred_region
        %s121 = ssub.s32 %s13, 1
        // Predicated region
        $region13: #{tpu_custom_call.1} parent=11 // pred_check
          %p122 = pneg %p60
        $region14: #{tpu_custom_call.1} parent=11 // pred_check_branch
          %124 = sbr.rel (%p122) target = $region16
        $region15: #{tpu_custom_call.1} parent=11 // pred_region
          _
        $region16: #{tpu_custom_call.1} parent=11 // pred_fallthru
          _
        // Predicated region
        $region17: #{tpu_custom_call.1} parent=11 // pred_check
          %p125 = pneg %p81
        $region18: #{tpu_custom_call.1} parent=11 // pred_check_branch
          %127 = sbr.rel (%p125) target = $region20
        $region19: #{tpu_custom_call.1} parent=11 // pred_region
          %s129 = ssub.s32 1024, 1024
          %130 = vsyncadd [#allocation3], %s129
          %s131 = sshll.u32 [#allocation2], 4
          %s132 = int_to_ptr.vmem [resolvable:$true] %s131
          %137 = dma.hbm_to_vmem [thread:$0]  %s2, 1024, %s132, [#allocation3], 128, 128, 8
        $region20: #{tpu_custom_call.1} parent=11 // pred_fallthru
          _
      $region12: #{tpu_custom_call.1} parent=5 // pred_fallthru
        _
      %p138 = scmp.lt.s32.totalorder %s13, 2
      // Predicated region
      $region21: #{tpu_custom_call.1} parent=5 // pred_check
        %p139 = pneg %p138
      $region22: #{tpu_custom_call.1} parent=5 // pred_check_branch
        %141 = sbr.rel (%p139) target = $region24
      $region23: #{tpu_custom_call.1} parent=5 // pred_region
        // Predicated region
        $region25: #{tpu_custom_call.1} parent=23 // pred_check
          %p142 = pneg %p33
        $region26: #{tpu_custom_call.1} parent=23 // pred_check_branch
          %144 = sbr.rel (%p142) target = $region28
        $region27: #{tpu_custom_call.1} parent=23 // pred_region
          %p145 = scmp.lt.s32.totalorder %s13, 1
          %s146 = scalar_select %p145, %s13, 1
          %s147 = smul.addr %s146, 2
          %s148 = smul.addr %s147, 8
          %s149 = scalar_lea.vmem %s0, %s148
        $region28: #{tpu_custom_call.1} parent=23 // pred_fallthru
          _
      $region24: #{tpu_custom_call.1} parent=5 // pred_fallthru
        _
      %p150 = scmp.le.s32.totalorder 1, %s13
      %p151 = scmp.lt.s32.totalorder %s13, 3
      %p152 = pnand %p150, %p151
      %p153 = pneg %p152
      // Predicated region
      $region29: #{tpu_custom_call.1} parent=5 // pred_check
        _
      $region30: #{tpu_custom_call.1} parent=5 // pred_check_branch
        %155 = sbr.rel (%p152) target = $region32
      $region31: #{tpu_custom_call.1} parent=5 // pred_region
        %s156 = ssub.s32 %s13, 1
        // Predicated region
        $region33: #{tpu_custom_call.1} parent=31 // pred_check
          %p157 = pneg %p81
        $region34: #{tpu_custom_call.1} parent=31 // pred_check_branch
          %159 = sbr.rel (%p157) target = $region36
        $region35: #{tpu_custom_call.1} parent=31 // pred_region
          %160 = dma.done [#allocation3], 1024
        $region36: #{tpu_custom_call.1} parent=31 // pred_fallthru
          _
        %p161 = scmp.lt.s32.totalorder %s18, 1
        %s162 = scalar_select %p161, %s18, 1
        %s163 = smul.addr %s162, 2
        %s164 = smul.addr %s163, 8
        %s165 = scalar_lea.vmem %s0, %s164
        %p166 = pneg %p39
        %p167 = pneg %p36
        %p168 = pneg %p60
        %p169 = pneg %p57
        %p170 = pneg %p81
        %p171 = pneg %p78
        %p172 = pneg %p107
        %p173 = pneg %p104
        %s174 = sand.u32 %s94, 1
        %s175 = scalar_lea.sflag [#allocation4], %s174
        %s176 = sand.u32 %s94, 1
        %s177 = smul.addr %s176, 32
        %s178 = scalar_lea.vmem [#allocation5], %s177
        %p179 = scmp.lt.s32.totalorder %s18, 1
        %s180 = scalar_select %p179, %s18, 1
        %s181 = smul.addr %s180, 2
        %s182 = smul.addr %s181, 8
        %s183 = scalar_lea.vmem %s0, %s182
        %v184 = vld [vmem:[%s1] sm:$0xff]
        %v185 = vld [vmem:[%s1 + $0x8] sm:$0xff]
        %v186 = vld [vmem:[%s1 + $0x10] sm:$0xff]
        %v187 = vld [vmem:[%s1 + $0x18] sm:$0xff]
        %v188 = vld [vmem:[%s183] sm:$0xff]
        %v189 = vld [vmem:[%s183 + $0x8] sm:$0xff]
        %vm190 = vcmask 130048
        %v192 = vsel %vm190, %v184, 0
        %v195 = vsel %vm190, %v185, 0
        %v198 = vsel %vm190, %v186, 0
        %v201 = vsel %vm190, %v187, 0
        %203 = vmatprep.subr.mxu0 0.0
        %204 = vmatpush1.msra.mxu0 %v188
        %205 = vmatprep.subr.mxu0 0.0
        %206 = vmatpush1.msra.mxu0 %v189
        %207 = vmatprep.subr.mxu0 0.0
        %208 = vmatpush1.msra.mxu0 0.0
        %209 = vmatprep.subr.mxu0 0.0
        %210 = vmatpush1.msra.mxu0 0.0
        %211 = vmatprep.subr.mxu0 0.0
        %212 = vmatpush1.msra.mxu0 0.0
        %213 = vmatprep.subr.mxu0 0.0
        %214 = vmatpush1.msra.mxu0 0.0
        %215 = vmatprep.subr.mxu0 0.0
        %216 = vmatpush1.msra.mxu0 0.0
        %217 = vmatprep.subr.mxu0 0.0
        %218 = vmatpush1.msra.mxu0 0.0
        %219 = vmatprep.subr.mxu0 0.0
        %220 = vmatpush1.msra.mxu0 0.0
        %221 = vmatprep.subr.mxu0 0.0
        %222 = vmatpush1.msra.mxu0 0.0
        %223 = vmatprep.subr.mxu0 0.0
        %224 = vmatpush1.msra.mxu0 0.0
        %225 = vmatprep.subr.mxu0 0.0
        %226 = vmatpush1.msra.mxu0 0.0
        %227 = vmatprep.subr.mxu0 0.0
        %228 = vmatpush1.msra.mxu0 0.0
        %229 = vmatprep.subr.mxu0 0.0
        %230 = vmatpush1.msra.mxu0 0.0
        %231 = vmatprep.subr.mxu0 0.0
        %232 = vmatpush1.msra.mxu0 0.0
        %233 = vmatprep.subr.mxu0 0.0
        %234 = vmatpush1.msra.mxu0 0.0
        %235 = vmatprep.subr.mxu0 0.0
        %236 = vmatpush1.msra.mxu0 0.0
        %237 = vmatprep.subr.mxu0 0.0
        %238 = vmatpush1.msra.mxu0 0.0
        %239 = vmatprep.subr.mxu0 0.0
        %240 = vmatpush1.msra.mxu0 0.0
        %241 = vmatprep.subr.mxu0 0.0
        %242 = vmatpush1.msra.mxu0 0.0
        %243 = vmatprep.subr.mxu0 0.0
        %244 = vmatpush1.msra.mxu0 0.0
        %245 = vmatprep.subr.mxu0 0.0
        %246 = vmatpush1.msra.mxu0 0.0
        %247 = vmatprep.subr.mxu0 0.0
        %248 = vmatpush1.msra.mxu0 0.0
        %249 = vmatprep.subr.mxu0 0.0
        %250 = vmatpush1.msra.mxu0 0.0
        %251 = vmatprep.subr.mxu0 0.0
        %252 = vmatpush1.msra.mxu0 0.0
        %253 = vmatprep.subr.mxu0 0.0
        %254 = vmatpush1.msra.mxu0 0.0
        %255 = vmatprep.subr.mxu0 0.0
        %256 = vmatpush1.msra.mxu0 0.0
        %257 = vmatprep.subr.mxu0 0.0
        %258 = vmatpush1.msra.mxu0 0.0
        %259 = vmatprep.subr.mxu0 0.0
        %260 = vmatpush1.msra.mxu0 0.0
        %261 = vmatprep.subr.mxu0 0.0
        %262 = vmatpush1.msra.mxu0 0.0
        %263 = vmatprep.subr.mxu0 0.0
        %264 = vmatpush1.msra.mxu0 0.0
        %265 = vmatprep.subr.mxu0 0.0
        %266 = vmatpush1.msra.mxu0 0.0
        %267 = vmatprep.mubr.f32.mxu0 0.0
        %268 = vmatmul.mubr.f32.gmra.mrb[0].mxu0 %v192
        %v269 = vpop.f32.mrb[0].mxu0
        %v270 = vadd.f32 0.0, %v269
        %v271 = vpop.f32.mrb[0].mxu0
        %272 = vmatprep.mubr.f32.mxu0 0.0
        %273 = vmatmul.mubr.f32.gmra.mrb[0].mxu0 %v195
        %v274 = vpop.f32.mrb[0].mxu0
        %v275 = vadd.f32 0.0, %v274
        %v276 = vpop.f32.mrb[0].mxu0
        %277 = vmatprep.mubr.f32.mxu0 0.0
        %278 = vmatmul.mubr.f32.gmra.mrb[0].mxu0 %v198
        %v279 = vpop.f32.mrb[0].mxu0
        %v280 = vadd.f32 0.0, %v279
        %v281 = vpop.f32.mrb[0].mxu0
        %282 = vmatprep.mubr.f32.mxu0 0.0
        %283 = vmatmul.mubr.f32.gmra.mrb[0].mxu0 %v201
        %v284 = vpop.f32.mrb[0].mxu0
        %v285 = vadd.f32 0.0, %v284
        %v286 = vpop.f32.mrb[0].mxu0
        %287 = vdwg.mxu0
        %v288 = vld [vmem:[#allocation2] sm:$0xff]
        %v289 = vld [vmem:[#allocation2 + $0x8] sm:$0xff]
        %v290 = vld [vmem:[#allocation2 + $0x10] sm:$0xff]
        %v291 = vld [vmem:[#allocation2 + $0x18] sm:$0xff]
        %v292 = vld [vmem:[#allocation2 + $0x20] sm:$0xff]
        %v293 = vld [vmem:[#allocation2 + $0x28] sm:$0xff]
        %v294 = vld [vmem:[#allocation2 + $0x30] sm:$0xff]
        %v295 = vld [vmem:[#allocation2 + $0x38] sm:$0xff]
        %vm296 = vcmask 523264
        %v298 = vsel %vm296, %v270, 0
        %v301 = vsel %vm296, %v275, 0
        %v304 = vsel %vm296, %v280, 0
        %v307 = vsel %vm296, %v285, 0
        %309 = vmatprep.subr.mxu0 0.0
        %310 = vmatpush1.msra.mxu0 %v288
        %311 = vmatprep.subr.mxu0 0.0
        %312 = vmatpush1.msra.mxu0 %v289
        %313 = vmatprep.subr.mxu0 0.0
        %314 = vmatpush1.msra.mxu0 %v290
        %315 = vmatprep.subr.mxu0 0.0
        %316 = vmatpush1.msra.mxu0 %v291
        %317 = vmatprep.subr.mxu0 0.0
        %318 = vmatpush1.msra.mxu0 %v292
        %319 = vmatprep.subr.mxu0 0.0
        %320 = vmatpush1.msra.mxu0 %v293
        %321 = vmatprep.subr.mxu0 0.0
        %322 = vmatpush1.msra.mxu0 %v294
        %323 = vmatprep.subr.mxu0 0.0
        %324 = vmatpush1.msra.mxu0 %v295
        %325 = vmatprep.subr.mxu0 0.0
        %326 = vmatpush1.msra.mxu0 0.0
        %327 = vmatprep.subr.mxu0 0.0
        %328 = vmatpush1.msra.mxu0 0.0
        %329 = vmatprep.subr.mxu0 0.0
        %330 = vmatpush1.msra.mxu0 0.0
        %331 = vmatprep.subr.mxu0 0.0
        %332 = vmatpush1.msra.mxu0 0.0
        %333 = vmatprep.subr.mxu0 0.0
        %334 = vmatpush1.msra.mxu0 0.0
        %335 = vmatprep.subr.mxu0 0.0
        %336 = vmatpush1.msra.mxu0 0.0
        %337 = vmatprep.subr.mxu0 0.0
        %338 = vmatpush1.msra.mxu0 0.0
        %339 = vmatprep.subr.mxu0 0.0
        %340 = vmatpush1.msra.mxu0 0.0
        %341 = vmatprep.subr.mxu0 0.0
        %342 = vmatpush1.msra.mxu0 0.0
        %343 = vmatprep.subr.mxu0 0.0
        %344 = vmatpush1.msra.mxu0 0.0
        %345 = vmatprep.subr.mxu0 0.0
        %346 = vmatpush1.msra.mxu0 0.0
        %347 = vmatprep.subr.mxu0 0.0
        %348 = vmatpush1.msra.mxu0 0.0
        %349 = vmatprep.subr.mxu0 0.0
        %350 = vmatpush1.msra.mxu0 0.0
        %351 = vmatprep.subr.mxu0 0.0
        %352 = vmatpush1.msra.mxu0 0.0
        %353 = vmatprep.subr.mxu0 0.0
        %354 = vmatpush1.msra.mxu0 0.0
        %355 = vmatprep.subr.mxu0 0.0
        %356 = vmatpush1.msra.mxu0 0.0
        %357 = vmatprep.subr.mxu0 0.0
        %358 = vmatpush1.msra.mxu0 0.0
        %359 = vmatprep.subr.mxu0 0.0
        %360 = vmatpush1.msra.mxu0 0.0
        %361 = vmatprep.subr.mxu0 0.0
        %362 = vmatpush1.msra.mxu0 0.0
        %363 = vmatprep.subr.mxu0 0.0
        %364 = vmatpush1.msra.mxu0 0.0
        %365 = vmatprep.subr.mxu0 0.0
        %366 = vmatpush1.msra.mxu0 0.0
        %367 = vmatprep.subr.mxu0 0.0
        %368 = vmatpush1.msra.mxu0 0.0
        %369 = vmatprep.subr.mxu0 0.0
        %370 = vmatpush1.msra.mxu0 0.0
        %371 = vmatprep.subr.mxu0 0.0
        %372 = vmatpush1.msra.mxu0 0.0
        %373 = vmatprep.mubr.f32.mxu0 0.0
        %374 = vmatmul.mubr.f32.gmra.mrb[0].mxu0 %v298
        %v375 = vpop.f32.mrb[0].mxu0
        %v376 = vadd.f32 0.0, %v375
        %v377 = vpop.f32.mrb[0].mxu0
        %378 = vmatprep.mubr.f32.mxu0 0.0
        %379 = vmatmul.mubr.f32.gmra.mrb[0].mxu0 %v301
        %v380 = vpop.f32.mrb[0].mxu0
        %v381 = vadd.f32 0.0, %v380
        %v382 = vpop.f32.mrb[0].mxu0
        %383 = vmatprep.mubr.f32.mxu0 0.0
        %384 = vmatmul.mubr.f32.gmra.mrb[0].mxu0 %v304
        %v385 = vpop.f32.mrb[0].mxu0
        %v386 = vadd.f32 0.0, %v385
        %v387 = vpop.f32.mrb[0].mxu0
        %388 = vmatprep.mubr.f32.mxu0 0.0
        %389 = vmatmul.mubr.f32.gmra.mrb[0].mxu0 %v307
        %v390 = vpop.f32.mrb[0].mxu0
        %v391 = vadd.f32 0.0, %v390
        %v392 = vpop.f32.mrb[0].mxu0
        %393 = vdwg.mxu0
        %394 = vst [vmem:[%s178] sm:$0xff] %v376
        %395 = vst [vmem:[%s178 + $0x8] sm:$0xff] %v381
        %396 = vst [vmem:[%s178 + $0x10] sm:$0xff] %v386
        %397 = vst [vmem:[%s178 + $0x18] sm:$0xff] %v391
        %s398 = sand.u32 %s94, 1
        %s399 = scalar_lea.sflag [#allocation4], %s398
        %s400 = sand.u32 %s94, 1
        %s401 = smul.addr %s400, 32
        %s402 = scalar_lea.vmem [#allocation5], %s401
        // Predicated region
        $region37: #{tpu_custom_call.1} parent=31 // pred_check
          %p403 = pneg %p104
        $region38: #{tpu_custom_call.1} parent=31 // pred_check_branch
          %405 = sbr.rel (%p403) target = $region40
        $region39: #{tpu_custom_call.1} parent=31 // pred_region
          %s407 = ssub.s32 512, 512
          %408 = vsyncadd %s399, %s407
          %s409 = smul.addr %s18, 4
          %s410 = smul.addr %s409, 128
          %s411 = scalar_lea.hbm %s3, %s410
          %s412 = sshll.u32 %s402, 4
          %s413 = int_to_ptr.vmem [resolvable:$true] %s412
          %418 = dma.vmem_to_hbm [thread:$0]  %s413, 512, %s411, %s399, 128, 128, 8
        $region40: #{tpu_custom_call.1} parent=31 // pred_fallthru
          _
      $region32: #{tpu_custom_call.1} parent=5 // pred_fallthru
        _
      %p419 = scmp.le.s32.totalorder 2, %s13
      // Predicated region
      $region41: #{tpu_custom_call.1} parent=5 // pred_check
        %p420 = pneg %p419
      $region42: #{tpu_custom_call.1} parent=5 // pred_check_branch
        %422 = sbr.rel (%p420) target = $region44
      $region43: #{tpu_custom_call.1} parent=5 // pred_region
        %s423 = ssub.s32 %s13, 2
        // Predicated region
        $region45: #{tpu_custom_call.1} parent=43 // pred_check
          %p424 = pneg %p110
        $region46: #{tpu_custom_call.1} parent=43 // pred_check_branch
          %426 = sbr.rel (%p424) target = $region48
        $region47: #{tpu_custom_call.1} parent=43 // pred_region
          %s427 = sand.u32 %s95, 1
          %s428 = scalar_lea.sflag [#allocation4], %s427
          %s429 = sand.u32 %s95, 1
          %s430 = smul.addr %s429, 32
          %s431 = scalar_lea.vmem [#allocation5], %s430
          %432 = dma.done %s428, 512
        $region48: #{tpu_custom_call.1} parent=43 // pred_fallthru
          _
      $region44: #{tpu_custom_call.1} parent=5 // pred_fallthru
        _
    $region6: #{tpu_custom_call.1} parent=1 // loop_footer
      %s17 = sadd.s32 1, %s13
    $region7: #{tpu_custom_call.1} parent=1 // loop_footer_branch
      %12 = sbr.rel target = $region3
    $region8: #{tpu_custom_call.1} parent=1 // loop_exit
      _
    %433 = vsyncpa [#allocation3], 1
    %s434 = scalar_lea.sflag [#allocation3], 1
    %435 = vsyncpa %s434, 1
    %436 = vsyncpa [#allocation4], 1
    %s437 = scalar_lea.sflag [#allocation4], 1
    %438 = vsyncpa %s437, 1

</llo_original>
